<compile_context>
chip_gen: v7x
topology: tpu7x:2x2x1
jax: 0.10.0
libtpu: 0.0.40
codegen_flags: <defaults>
</compile_context>

<pallas_src>
import jax
import jax.numpy as jnp
from jax.experimental import pallas as pl
from jax.experimental.pallas import tpu as pltpu

_LANE = 128
_ROW_ALIGN = 32          # LCM of f32 (8), bf16 (16), int8/fp8 (32) sublane packing
_MIN_SPLIT_ROWS = 1024   # ~512 KiB f32: only split across cores above this


def _dsilu_kernel(x_ref, o_ref):
    x = x_ref[...].astype(jnp.float32)
    s = jax.nn.sigmoid(x)
    o_ref[...] = (s * (1.0 + x * (1.0 - s))).astype(o_ref.dtype)


def _num_tensorcores():
    """Best-effort TensorCores-per-chip (1 on v5e/v6e, 2 on v7x). Never raises."""
    try:
        info = pltpu.get_tpu_info()
        for name in ("num_cores", "core_count", "num_tensorcores",
                     "tensor_core_count", "tensorcores_per_chip"):
            v = getattr(info, name, None)
            if v is not None:
                v = int(v)
                if v > 0:
                    return v
    except Exception:
        pass
    return 1


def _pick_tile_rows(rows, itemsize, target_block_bytes, num_cores):
    """Block height in sublane rows.

    - sized in bytes so every dtype gets the same-size DMAs,
    - aligned to 32 rows (native tiling down to int8/fp8),
    - Pallas masks the ragged last block, so no unbounded full-extent fallback,
    - on multi-TensorCore chips, medium arrays are split so every core gets work;
      on single-core chips small arrays stay as one block (no pointless split).
    """
    budget_rows = max(
        _ROW_ALIGN,
        (target_block_bytes // (_LANE * itemsize)) // _ROW_ALIGN * _ROW_ALIGN)
    if rows > budget_rows:
        return budget_rows                       # ragged last block is masked
    if num_cores > 1 and rows >= 2 * _MIN_SPLIT_ROWS:
        per_core = pl.cdiv(pl.cdiv(rows, num_cores), _ROW_ALIGN) * _ROW_ALIGN
        return max(_ROW_ALIGN, per_core)
    return rows                                  # full-extent block (always legal)


def _dsilu_2d(x2d, *, tile_rows):
    rows, _ = x2d.shape
    n = x2d.size
    itemsize = jnp.dtype(x2d.dtype).itemsize
    block_bytes = tile_rows * _LANE * itemsize
    # in + out, double buffered = 4 x block; leave headroom, cap under v7x's 64 MiB.
    vmem_limit = int(min(64 << 20, max(32 << 20, 4 * block_bytes + (4 << 20))))
    return pl.pallas_call(
        _dsilu_kernel,
        out_shape=jax.ShapeDtypeStruct((rows, _LANE), x2d.dtype),
        grid=(pl.cdiv(rows, tile_rows),),
        in_specs=[pl.BlockSpec((tile_rows, _LANE), lambda i: (i, 0))],
        out_specs=pl.BlockSpec((tile_rows, _LANE), lambda i: (i, 0)),
        compiler_params=pltpu.CompilerParams(
            dimension_semantics=("parallel",),
            vmem_limit_bytes=vmem_limit),
        cost_estimate=pl.CostEstimate(
            flops=4 * n,
            transcendentals=n,
            bytes_accessed=2 * n * itemsize),
    )(x2d)


def dsilu(x, *, target_block_bytes=8 << 20):
    """dSiLU(x) = sigmoid(x) * (1 + x * (1 - sigmoid(x))) — purely elementwise."""
    orig_shape = x.shape
    n = x.size
    if n == 0:
        return x
    itemsize = jnp.dtype(x.dtype).itemsize
    num_cores = _num_tensorcores()

    x_flat = x.reshape(-1)
    n_main = (n // _LANE) * _LANE
    rows = n_main // _LANE

    if n_main == n:
        # Common case: element count is a multiple of 128 -> zero-copy reshape.
        tr = _pick_tile_rows(rows, itemsize, target_block_bytes, num_cores)
        out = _dsilu_2d(x_flat.reshape(rows, _LANE), tile_rows=tr)
        return out.reshape(orig_shape)

    # Unaligned: kernel on the 128-aligned prefix, plain jnp on the (<128 elem)
    # tail. Avoids the full-array jnp.pad + trailing-slice HBM passes.
    tail = x_flat[n_main:]
    s = jax.nn.sigmoid(tail)
    out_tail = (s * (1.0 + tail * (1.0 - s))).astype(x.dtype)
    if rows == 0:
        return out_tail.reshape(orig_shape)
    tr = _pick_tile_rows(rows, itemsize, target_block_bytes, num_cores)
    out_main = _dsilu_2d(x_flat[:n_main].reshape(rows, _LANE), tile_rows=tr)
    return jnp.concatenate([out_main.reshape(-1), out_tail]).reshape(orig_shape)


def dsilu_ref(x):
    s = jax.nn.sigmoid(x)
    return s * (1.0 + x * (1.0 - s))


if __name__ == "__main__":
    key = jax.random.PRNGKey(0)
    k1, k2, k3, k4 = jax.random.split(key, 4)

    # NCHW activation matching the PyTorch module's typical usage (128-aligned
    # element count -> pure kernel path).
    x = jax.random.normal(k1, (2, 4, 16, 16), dtype=jnp.float32)
    out = jax.block_until_ready(dsilu(x))
    assert out.shape == x.shape and out.dtype == x.dtype
    assert jnp.allclose(out, dsilu_ref(x), atol=1e-6, rtol=1e-6)

    # Element count not a multiple of 128: kernel on the prefix + jnp tail.
    x2 = jax.random.normal(k2, (5, 300), dtype=jnp.float32)
    out2 = jax.block_until_ready(dsilu(x2))
    assert out2.shape == x2.shape
    assert jnp.allclose(out2, dsilu_ref(x2), atol=1e-6, rtol=1e-6)

    # Tiny (< 128 elements) input.
    x3 = jax.random.normal(k3, (3, 5, 7), dtype=jnp.float32)
    out3 = jax.block_until_ready(dsilu(x3))
    assert jnp.allclose(out3, dsilu_ref(x3), atol=1e-6, rtol=1e-6)

    # Multi-step grid with a ragged (masked) last block: force tiny blocks.
    x4 = jax.random.normal(k4, (40, 128), dtype=jnp.float32)
    out4 = jax.block_until_ready(dsilu(x4, target_block_bytes=32 * 128 * 4))
    assert jnp.allclose(out4, dsilu_ref(x4), atol=1e-6, rtol=1e-6)

    print("KERNEL_OK")
</pallas_src>

<mosaic_0001>
module attributes {stable_mosaic.version = 11 : i64} {
  func.func @_dsilu_kernel(%arg0: i32, %arg1: memref<16x128xf32, #tpu.memory_space<vmem>>, %arg2: memref<16x128xf32, #tpu.memory_space<vmem>>) attributes {dimension_semantics = [#tpu.dimension_semantics<parallel>], iteration_bounds = array<i64: 1>, scalar_prefetch = 0 : i64, scratch_operands = 0 : i64, tpu.core_type = #tpu.core_type<tc>, window_params = [{transform_indices = @transform_0, window_bounds = array<i64: 16, 128>}, {transform_indices = @transform_1, window_bounds = array<i64: 16, 128>}]} {
    %c0 = arith.constant 0 : index
    %c0_0 = arith.constant 0 : index
    %0 = vector.load %arg1[%c0, %c0_0] : memref<16x128xf32, #tpu.memory_space<vmem>>, vector<16x128xf32>
    %1 = arith.negf %0 : vector<16x128xf32>
    %2 = math.exp %1 : vector<16x128xf32>
    %cst = arith.constant 1.000000e+00 : f32
    %3 = vector.broadcast %cst : f32 to vector<16x128xf32>
    %4 = arith.addf %3, %2 : vector<16x128xf32>
    %5 = arith.divf %3, %4 : vector<16x128xf32>
    %cst_1 = arith.constant 1.000000e+00 : f32
    %6 = vector.broadcast %cst_1 : f32 to vector<16x128xf32>
    %7 = arith.subf %6, %5 : vector<16x128xf32>
    %8 = arith.mulf %0, %7 : vector<16x128xf32>
    %cst_2 = arith.constant 1.000000e+00 : f32
    %9 = vector.broadcast %cst_2 : f32 to vector<16x128xf32>
    %10 = arith.addf %9, %8 : vector<16x128xf32>
    %11 = arith.mulf %5, %10 : vector<16x128xf32>
    %c0_3 = arith.constant 0 : index
    %c0_4 = arith.constant 0 : index
    %12 = vector.load %arg2[%c0_3, %c0_4] : memref<16x128xf32, #tpu.memory_space<vmem>>, vector<16x128xf32>
    tpu.vector_store %arg2[%c0_3, %c0_4], %11 {strides = array<i32>} : memref<16x128xf32, #tpu.memory_space<vmem>>, vector<16x128xf32>,
    return
  }
  func.func @transform_0(%arg0: i32) -> (i32, i32) {
    %c0_i32 = arith.constant 0 : i32
    %c0_i32_0 = arith.constant 0 : i32
    return %arg0, %c0_i32 : i32, i32
  }
  func.func @transform_1(%arg0: i32) -> (i32, i32) {
    %c0_i32 = arith.constant 0 : i32
    %c0_i32_0 = arith.constant 0 : i32
    return %arg0, %c0_i32 : i32, i32
  }
}

</mosaic_0001>

<llo_original>
// kernel: tpu_custom_call.1
$region0: #{tpu_custom_call.1}
  #allocation0 [shape = 'u32[]', space=smem, size = 0x4, offset = 0x4, fixed_abs, tag = 'smem constant byte address 0x4 - core index']
  #allocation1 [shape = 'u32[144,128]{1,0:T(1,128)}', space=vmem, size = 0x12000, scoped, tag = 'internal scratch']
  %s0 = inlined_call_operand.hbm [shape: f32[16,128], index: 0, kind: input, shape index: {}]
  %s1 = inlined_call_operand.hbm [shape: f32[16,128], index: 1, kind: output, shape index: {}]
  %s2 = sld [smem:[#allocation0]]
  $region18: #{tpu_custom_call.1} parent=0
    _
  %s4 = ssub.s32 1, %s2
  %s5 = scalar_select 0, %s4, %s2
  $region1: #{tpu_custom_call.1} parent=0
    #allocation2 [shape = 'u8[8192]{0}', space=vmem, size = 0x2000, scoped, tag = 'input window, operand 0, single buffered']
    #allocation3 [shape = 's32[1]{0}', space=sflag, size = 0x4, scoped, tag = 'scoped memory for tpu_custom_call.1']
    #allocation4 [shape = 's32[1]{0}', space=sflag, size = 0x4, scoped, tag = 'scoped memory for tpu_custom_call.1']
    #allocation5 [shape = 'u8[8192]{0}', space=vmem, size = 0x2000, scoped, tag = 'output window, operand 0, single buffered']
    %6 = vsyncpa [#allocation3], 0
    %7 = vsyncpa [#allocation4], 0
    // Predicated region
    $region2: #{tpu_custom_call.1} parent=1 // pred_check
      _
    $region3: #{tpu_custom_call.1} parent=1 // pred_check_branch
      %9 = sbr.rel (0) target = $region5
    $region4: #{tpu_custom_call.1} parent=1 // pred_region
      %s11 = ssub.s32 256, 256
      %12 = vsyncadd [#allocation3], %s11
      %s13 = sshll.u32 [#allocation2], 4
      %s14 = int_to_ptr.vmem [resolvable:$true] %s13
      %19 = dma.hbm_to_vmem [thread:$0]  %s0, 256, %s14, [#allocation3], 128, 128, 8
    $region5: #{tpu_custom_call.1} parent=1 // pred_fallthru
      _
    // Predicated region
    $region6: #{tpu_custom_call.1} parent=1 // pred_check
      _
    $region7: #{tpu_custom_call.1} parent=1 // pred_check_branch
      %21 = sbr.rel (0) target = $region9
    $region8: #{tpu_custom_call.1} parent=1 // pred_region
      %22 = dma.done [#allocation3], 256
    $region9: #{tpu_custom_call.1} parent=1 // pred_fallthru
      _
    %v23 = vld [vmem:[#allocation2] sm:$0xff]
    %v24 = vld [vmem:[#allocation2 + $0x8] sm:$0xff]
    %v25 = vxor.u32 %v23, 2147483648
    %v26 = vxor.u32 %v24, 2147483648
    %v27 = vmul.f32 %v25, 1.442695
    %v28 = vpow.pop %v27
    %v29 = vmul.f32 %v26, 1.442695
    %v30 = vpow.pop %v29
    %v31 = vadd.f32 %v28, 1.0
    %v32 = vadd.f32 %v30, 1.0
    %v33 = vrcp.pop %v31
    %v34 = vmul.f32 1.0, %v33
    %v35 = vrcp.pop %v32
    %v36 = vmul.f32 1.0, %v35
    %v37 = vsub.f32 1.0, %v34
    %v38 = vsub.f32 1.0, %v36
    %v39 = vmul.f32 %v23, %v37
    %v40 = vmul.f32 %v24, %v38
    %v41 = vadd.f32 %v39, 1.0
    %v42 = vadd.f32 %v40, 1.0
    %v43 = vmul.f32 %v34, %v41
    %v44 = vmul.f32 %v36, %v42
    %45 = vst [vmem:[#allocation5] sm:$0xff] %v43
    %46 = vst [vmem:[#allocation5 + $0x8] sm:$0xff] %v44
    // Predicated region
    $region10: #{tpu_custom_call.1} parent=1 // pred_check
      _
    $region11: #{tpu_custom_call.1} parent=1 // pred_check_branch
      %48 = sbr.rel (0) target = $region13
    $region12: #{tpu_custom_call.1} parent=1 // pred_region
      %s50 = ssub.s32 256, 256
      %51 = vsyncadd [#allocation4], %s50
      %s52 = sshll.u32 [#allocation5], 4
      %s53 = int_to_ptr.vmem [resolvable:$true] %s52
      %58 = dma.vmem_to_hbm [thread:$0]  %s53, 256, %s1, [#allocation4], 128, 128, 8
    $region13: #{tpu_custom_call.1} parent=1 // pred_fallthru
      _
    // Predicated region
    $region14: #{tpu_custom_call.1} parent=1 // pred_check
      _
    $region15: #{tpu_custom_call.1} parent=1 // pred_check_branch
      %60 = sbr.rel (0) target = $region17
    $region16: #{tpu_custom_call.1} parent=1 // pred_region
      %61 = dma.done [#allocation4], 256
    $region17: #{tpu_custom_call.1} parent=1 // pred_fallthru
      _
    %62 = vsyncpa [#allocation3], 1
    %63 = vsyncpa [#allocation4], 1

</llo_original>
